<compile_context>
chip_gen: v7x
topology: tpu7x:2x2x1
jax: 0.10.0
libtpu: 0.0.40
codegen_flags: <defaults>
</compile_context>

<pallas_src>
import functools

import jax
import jax.numpy as jnp
from jax import lax
from jax.experimental import pallas as pl
from jax.experimental.pallas import tpu as pltpu

TOKEN_BLOCK = 128  # tokens per grid step (sublane-friendly, amortizes per-step overhead)


def _embed_dropout_kernel(seed_ref, ids_ref, table_ref, out_ref, *, dropout_p):
    """One grid step: gather TOKEN_BLOCK rows from the VMEM-resident table,
    apply dropout, store a lane-dense (TOKEN_BLOCK, Dp) tile."""
    tb, dp = out_ref.shape
    vp = table_ref.shape[0]

    # --- gather via one-hot matmul on the MXU -------------------------------
    ids = ids_ref[...]                                         # (TB, 1) int32
    vocab_iota = lax.broadcasted_iota(jnp.int32, (tb, vp), 1)  # (TB, Vp)
    onehot = (ids == vocab_iota).astype(table_ref.dtype)       # (TB, Vp)
    rows = jnp.dot(onehot, table_ref[...],
                   preferred_element_type=jnp.float32)         # (TB, Dp) f32

    # --- dropout (training semantics) ---------------------------------------
    if dropout_p > 0.0:
        base = pl.program_id(0) * (tb * dp)
        r = lax.broadcasted_iota(jnp.int32, (tb, dp), 0)
        c = lax.broadcasted_iota(jnp.int32, (tb, dp), 1)
        idx = (base + r * dp + c).astype(jnp.uint32)
        seed = seed_ref[0].astype(jnp.uint32) * jnp.uint32(0x9E3779B9)

        # splitmix32-style mix of (global index + seed)
        x = idx + seed
        x = x ^ (x >> jnp.uint32(16))
        x = x * jnp.uint32(0x7FEB352D)
        x = x ^ (x >> jnp.uint32(15))
        x = x * jnp.uint32(0x846CA68B)
        x = x ^ (x >> jnp.uint32(16))

        # integer-domain keep decision: top 24 bits uniform in [0, 2^24)
        r24 = (x >> jnp.uint32(8)).astype(jnp.int32)
        thresh = jnp.int32(int(round(dropout_p * float(1 << 24))))
        keep = r24 >= thresh
        scale = jnp.float32(1.0 / (1.0 - dropout_p))
        rows = jnp.where(keep, rows * scale, jnp.float32(0.0))

    out_ref[...] = rows.astype(out_ref.dtype)


def embed_layer_forward(ids, emb_table, *, dropout_p=0.25, seed=0):
    """JAX wrapper reproducing Embed_Layer.forward(x, dropout_p)."""
    B, S = ids.shape
    V1, D = emb_table.shape            # (vocab_size + 1, embedding_dim)
    N = B * S

    tb = TOKEN_BLOCK
    n_blocks = -(-N // tb)
    n_pad = n_blocks * tb
    d_pad = -(-D // 128) * 128         # lane-dense embedding dim (300 -> 384)
    v_pad = -(-V1 // 8) * 8            # sublane-friendly vocab rows

    # Padded, VMEM-resident table (zeros in padding -> padded lanes stay 0).
    table_p = jnp.zeros((v_pad, d_pad), emb_table.dtype).at[:V1, :D].set(emb_table)
    # Token ids as a (N_pad, 1) column so the per-block view broadcasts cleanly.
    ids_p = jnp.zeros((n_pad, 1), jnp.int32).at[:N, 0].set(
        ids.reshape(N).astype(jnp.int32))
    seed_arr = jnp.asarray([seed], dtype=jnp.int32)

    out = pl.pallas_call(
        functools.partial(_embed_dropout_kernel, dropout_p=float(dropout_p)),
        out_shape=jax.ShapeDtypeStruct((n_pad, d_pad), emb_table.dtype),
        grid_spec=pltpu.PrefetchScalarGridSpec(
            num_scalar_prefetch=1,                 # seed -> SMEM
            grid=(n_blocks,),
            in_specs=[
                pl.BlockSpec((tb, 1), lambda i, seed: (i, 0)),        # ids block
                pl.BlockSpec((v_pad, d_pad), lambda i, seed: (0, 0)), # whole table
            ],
            out_specs=pl.BlockSpec((tb, d_pad), lambda i, seed: (i, 0)),
        ),
        compiler_params=pltpu.CompilerParams(
            dimension_semantics=("parallel",),     # independent blocks (v7x: 2 TCs)
        ),
    )(seed_arr, ids_p, table_p)

    return out[:N, :D].reshape(B, S, D)


if __name__ == "__main__":
    # Small, deterministic setup consistent with the module:
    # vocab_size=50 -> embedding table (vocab_size+1, embedding_dim)
    B, S = 2, 8
    vocab_size = 50
    embedding_dim = 300

    key = jax.random.PRNGKey(0)
    k_ids, k_emb = jax.random.split(key)

    ids = jax.random.randint(k_ids, (B, S), 0, vocab_size + 1, dtype=jnp.int32)
    # Deterministic synthetic "pretrained" embedding matrix (no file loading).
    emb_table = jax.random.normal(k_emb, (vocab_size + 1, embedding_dim),
                                  dtype=jnp.float32)

    # Forward with the module's default dropout_p=0.25 (training-mode dropout).
    out = embed_layer_forward(ids, emb_table, dropout_p=0.25, seed=1234)
    out = jax.block_until_ready(out)
    assert out.shape == (B, S, embedding_dim)

    # Sanity check: with dropout_p=0 the kernel must be an exact embedding lookup.
    out_nodrop = embed_layer_forward(ids, emb_table, dropout_p=0.0, seed=0)
    out_nodrop = jax.block_until_ready(out_nodrop)
    ref = emb_table[ids]
    assert jnp.allclose(out_nodrop, ref, atol=1e-6), "gather mismatch vs reference lookup"

    # Dropout check: surviving elements are the original value scaled by 1/(1-p),
    # dropped elements are exactly zero.
    scaled_ref = ref / (1.0 - 0.25)
    match_or_zero = jnp.isclose(out, scaled_ref, atol=1e-5) | jnp.isclose(out, 0.0)
    assert bool(jnp.all(match_or_zero)), "dropout output inconsistent"

    # The drop rate should be in the right ballpark (p=0.25 over 4800 elements).
    drop_frac = float(jnp.mean((out == 0.0).astype(jnp.float32)))
    assert 0.10 < drop_frac < 0.40, f"dropout rate looks degenerate: {drop_frac}"

    print("KERNEL_OK")
</pallas_src>

<mosaic_0001>
module attributes {stable_mosaic.version = 11 : i64} {
  func.func @_embed_dropout_kernel(%arg0: i32, %arg1: memref<1xi32, #tpu.memory_space<smem>>, %arg2: memref<128x1xi32, #tpu.memory_space<vmem>>, %arg3: memref<56x384xf32, #tpu.memory_space<vmem>>, %arg4: memref<128x384xf32, #tpu.memory_space<vmem>>) attributes {dimension_semantics = [#tpu.dimension_semantics<parallel>], iteration_bounds = array<i64: 1>, scalar_prefetch = 1 : i64, scratch_operands = 0 : i64, tpu.core_type = #tpu.core_type<tc>, window_params = [{transform_indices = @transform_0, window_bounds = array<i64: 128, 1>}, {pipeline_mode = #tpu.pipeline_mode<synchronous>, transform_indices = @transform_1, window_bounds = array<i64: 56, 384>}, {transform_indices = @transform_2, window_bounds = array<i64: 128, 384>}]} {
    %c0 = arith.constant 0 : index
    %c0_0 = arith.constant 0 : index
    %0 = vector.load %arg2[%c0, %c0_0] : memref<128x1xi32, #tpu.memory_space<vmem>>, vector<128x1xi32>
    %1 = tpu.iota {dimensions = array<i32: 1>} : vector<128x56xi32>
    %2 = vector.broadcast %0 : vector<128x1xi32> to vector<128x56xi32>
    %3 = arith.cmpi eq, %2, %1 : vector<128x56xi32>
    %4 = arith.extui %3 : vector<128x56xi1> to vector<128x56xi32>
    %5 = arith.sitofp %4 : vector<128x56xi32> to vector<128x56xf32>
    %c0_1 = arith.constant 0 : index
    %c0_2 = arith.constant 0 : index
    %6 = vector.load %arg3[%c0_1, %c0_2] : memref<56x384xf32, #tpu.memory_space<vmem>>, vector<56x384xf32>
    %cst = arith.constant dense<0.000000e+00> : vector<128x384xf32>
    %7 = tpu.matmul %5, %6, %cst {dimension_numbers = #tpu.dot_dimension_numbers<[1], [0], [0], [1], [0, 0, 1, 1], [], []>} : vector<128x56xf32>, vector<56x384xf32>, vector<128x384xf32> -> vector<128x384xf32>
    %c49152_i32 = arith.constant 49152 : i32
    %8 = arith.muli %arg0, %c49152_i32 : i32
    %9 = tpu.iota {dimensions = array<i32: 0>} : vector<128x384xi32>
    %10 = tpu.iota {dimensions = array<i32: 1>} : vector<128x384xi32>
    %c384_i32 = arith.constant 384 : i32
    %11 = vector.broadcast %c384_i32 : i32 to vector<128x384xi32>
    %12 = arith.muli %9, %11 : vector<128x384xi32>
    %13 = vector.broadcast %8 : i32 to vector<128x384xi32>
    %14 = arith.addi %13, %12 : vector<128x384xi32>
    %15 = arith.addi %14, %10 : vector<128x384xi32>
    %c0_3 = arith.constant 0 : index
    %16 = memref.load %arg1[%c0_3] : memref<1xi32, #tpu.memory_space<smem>>
    %c-1640531527_i32 = arith.constant -1640531527 : i32
    %17 = arith.muli %16, %c-1640531527_i32 : i32
    %18 = vector.broadcast %17 : i32 to vector<128x384xi32>
    %19 = arith.addi %15, %18 : vector<128x384xi32>
    %c16_i32 = arith.constant 16 : i32
    %20 = vector.broadcast %c16_i32 : i32 to vector<128x384xi32>
    %21 = arith.shrui %19, %20 : vector<128x384xi32>
    %22 = arith.xori %19, %21 : vector<128x384xi32>
    %c2146121005_i32 = arith.constant 2146121005 : i32
    %23 = vector.broadcast %c2146121005_i32 : i32 to vector<128x384xi32>
    %24 = arith.muli %22, %23 : vector<128x384xi32>
    %c15_i32 = arith.constant 15 : i32
    %25 = vector.broadcast %c15_i32 : i32 to vector<128x384xi32>
    %26 = arith.shrui %24, %25 : vector<128x384xi32>
    %27 = arith.xori %24, %26 : vector<128x384xi32>
    %c-2073254261_i32 = arith.constant -2073254261 : i32
    %28 = vector.broadcast %c-2073254261_i32 : i32 to vector<128x384xi32>
    %29 = arith.muli %27, %28 : vector<128x384xi32>
    %c16_i32_4 = arith.constant 16 : i32
    %30 = vector.broadcast %c16_i32_4 : i32 to vector<128x384xi32>
    %31 = arith.shrui %29, %30 : vector<128x384xi32>
    %32 = arith.xori %29, %31 : vector<128x384xi32>
    %c8_i32 = arith.constant 8 : i32
    %33 = vector.broadcast %c8_i32 : i32 to vector<128x384xi32>
    %34 = arith.shrui %32, %33 : vector<128x384xi32>
    %c4194304_i32 = arith.constant 4194304 : i32
    %35 = vector.broadcast %c4194304_i32 : i32 to vector<128x384xi32>
    %36 = arith.cmpi sge, %34, %35 : vector<128x384xi32>
    %cst_5 = arith.constant 1.33333337 : f32
    %37 = vector.broadcast %cst_5 : f32 to vector<128x384xf32>
    %38 = arith.mulf %7, %37 : vector<128x384xf32>
    %cst_6 = arith.constant 0.000000e+00 : f32
    %39 = vector.broadcast %cst_6 : f32 to vector<128x384xf32>
    %40 = arith.select %36, %38, %39 : vector<128x384xi1>, vector<128x384xf32>
    %c0_7 = arith.constant 0 : index
    %c0_8 = arith.constant 0 : index
    %41 = vector.load %arg4[%c0_7, %c0_8] : memref<128x384xf32, #tpu.memory_space<vmem>>, vector<128x384xf32>
    tpu.vector_store %arg4[%c0_7, %c0_8], %40 {strides = array<i32>} : memref<128x384xf32, #tpu.memory_space<vmem>>, vector<128x384xf32>,
    return
  }
  func.func @transform_0(%arg0: i32, %arg1: memref<1xi32, #tpu.memory_space<smem>>) -> (i32, i32) {
    %c0_i32 = arith.constant 0 : i32
    %c0_i32_0 = arith.constant 0 : i32
    return %arg0, %c0_i32 : i32, i32
  }
  func.func @transform_1(%arg0: i32, %arg1: memref<1xi32, #tpu.memory_space<smem>>) -> (i32, i32) {
    %c0_i32 = arith.constant 0 : i32
    %c0_i32_0 = arith.constant 0 : i32
    %c0_i32_1 = arith.constant 0 : i32
    return %c0_i32, %c0_i32_0 : i32, i32
  }
  func.func @transform_2(%arg0: i32, %arg1: memref<1xi32, #tpu.memory_space<smem>>) -> (i32, i32) {
    %c0_i32 = arith.constant 0 : i32
    %c0_i32_0 = arith.constant 0 : i32
    return %arg0, %c0_i32 : i32, i32
  }
}

</mosaic_0001>

<llo_original>
// kernel: tpu_custom_call.1
$region0: #{tpu_custom_call.1}
  #allocation0 [shape = 'u32[]', space=smem, size = 0x4, offset = 0x4, fixed_abs, tag = 'smem constant byte address 0x4 - core index']
  #allocation1 [shape = 'u32[144,128]{1,0:T(1,128)}', space=vmem, size = 0x12000, scoped, tag = 'internal scratch']
  #allocation2 [shape = 's32[1]{0}', space=sflag, size = 0x4, scoped, tag = 'scoped memory for tpu_custom_call.1']
  #allocation3 [shape = 's32[1]{0:T(128)S(6)}', space=smem, size = 0x200, scoped, tag = 'prefetched SMEM operand 0']
  %s0 = inlined_call_operand.<no memory space> [shape: s32[1], index: 0, kind: input, shape index: {}]
  %s1 = inlined_call_operand.vmem [shape: s32[128,1], index: 1, kind: input, shape index: {}]
  %s2 = inlined_call_operand.hbm [shape: f32[56,384], index: 2, kind: input, shape index: {}]
  %s3 = inlined_call_operand.hbm [shape: f32[128,384], index: 3, kind: output, shape index: {}]
  %s4 = sld [smem:[#allocation0]]
  $region22: #{tpu_custom_call.1} parent=0
    _
  %s6 = ssub.s32 1, %s4
  %s7 = scalar_select 0, %s6, %s4
  %8 = sst [smem:[#allocation3]] %s0
  $region1: #{tpu_custom_call.1} parent=0
    #allocation4 [shape = 'u8[86016]{0}', space=vmem, size = 0x15000, scoped, tag = 'input window, operand 2, single buffered']
    #allocation5 [shape = 's32[1]{0}', space=sflag, size = 0x4, scoped, tag = 'scoped memory for tpu_custom_call.1']
    #allocation6 [shape = 's32[1]{0}', space=sflag, size = 0x4, scoped, tag = 'scoped memory for tpu_custom_call.1']
    #allocation7 [shape = 'u8[196608]{0}', space=vmem, size = 0x30000, scoped, tag = 'output window, operand 0, single buffered']
    %9 = vsyncpa [#allocation5], 0
    %10 = vsyncpa [#allocation6], 0
    // Predicated region
    $region2: #{tpu_custom_call.1} parent=1 // pred_check
      _
    $region3: #{tpu_custom_call.1} parent=1 // pred_check_branch
      %12 = sbr.rel (0) target = $region5
    $region4: #{tpu_custom_call.1} parent=1 // pred_region
      _
    $region5: #{tpu_custom_call.1} parent=1 // pred_fallthru
      _
    // Predicated region
    $region6: #{tpu_custom_call.1} parent=1 // pred_check
      _
    $region7: #{tpu_custom_call.1} parent=1 // pred_check_branch
      %14 = sbr.rel (0) target = $region9
    $region8: #{tpu_custom_call.1} parent=1 // pred_region
      %s16 = ssub.s32 2688, 2688
      %17 = vsyncadd [#allocation5], %s16
      %s18 = sshll.u32 [#allocation4], 4
      %s19 = int_to_ptr.vmem [resolvable:$true] %s18
      %24 = dma.hbm_to_vmem [thread:$0]  %s2, 2688, %s19, [#allocation5], 384, 384, 24
    $region9: #{tpu_custom_call.1} parent=1 // pred_fallthru
      _
    // Predicated region
    $region10: #{tpu_custom_call.1} parent=1 // pred_check
      _
    $region11: #{tpu_custom_call.1} parent=1 // pred_check_branch
      %26 = sbr.rel (0) target = $region13
    $region12: #{tpu_custom_call.1} parent=1 // pred_region
      %27 = dma.done [#allocation5], 2688
    $region13: #{tpu_custom_call.1} parent=1 // pred_fallthru
      _
    %v28 = vld [vmem:[%s1] sm:$0xff]
    %v29 = vld [vmem:[%s1 + $0x8] sm:$0xff]
    %v30 = vld [vmem:[%s1 + $0x10] sm:$0xff]
    %v31 = vld [vmem:[%s1 + $0x18] sm:$0xff]
    %v32 = vld [vmem:[%s1 + $0x20] sm:$0xff]
    %v33 = vld [vmem:[%s1 + $0x28] sm:$0xff]
    %v34 = vld [vmem:[%s1 + $0x30] sm:$0xff]
    %v35 = vld [vmem:[%s1 + $0x38] sm:$0xff]
    %v36 = vld [vmem:[%s1 + $0x40] sm:$0xff]
    %v37 = vld [vmem:[%s1 + $0x48] sm:$0xff]
    %v38 = vld [vmem:[%s1 + $0x50] sm:$0xff]
    %v39 = vld [vmem:[%s1 + $0x58] sm:$0xff]
    %v40 = vld [vmem:[%s1 + $0x60] sm:$0xff]
    %v41 = vld [vmem:[%s1 + $0x68] sm:$0xff]
    %v42 = vld [vmem:[%s1 + $0x70] sm:$0xff]
    %v43 = vld [vmem:[%s1 + $0x78] sm:$0xff]
    %v44 = vlaneseq
    %v45 = vand.u32 %v44, 127
    %46 = vset.pattern.permute.xlu0 0
    %47 = vperm.xlu0 %46, %v28
    %v48 = vpop.permute.xlu0 %47
    %49 = vset.pattern.permute.xlu0 0
    %50 = vperm.xlu0 %49, %v29
    %v51 = vpop.permute.xlu0 %50
    %52 = vset.pattern.permute.xlu0 0
    %53 = vperm.xlu0 %52, %v30
    %v54 = vpop.permute.xlu0 %53
    %55 = vset.pattern.permute.xlu0 0
    %56 = vperm.xlu0 %55, %v31
    %v57 = vpop.permute.xlu0 %56
    %58 = vset.pattern.permute.xlu0 0
    %59 = vperm.xlu0 %58, %v32
    %v60 = vpop.permute.xlu0 %59
    %61 = vset.pattern.permute.xlu0 0
    %62 = vperm.xlu0 %61, %v33
    %v63 = vpop.permute.xlu0 %62
    %64 = vset.pattern.permute.xlu0 0
    %65 = vperm.xlu0 %64, %v34
    %v66 = vpop.permute.xlu0 %65
    %67 = vset.pattern.permute.xlu0 0
    %68 = vperm.xlu0 %67, %v35
    %v69 = vpop.permute.xlu0 %68
    %70 = vset.pattern.permute.xlu0 0
    %71 = vperm.xlu0 %70, %v36
    %v72 = vpop.permute.xlu0 %71
    %73 = vset.pattern.permute.xlu0 0
    %74 = vperm.xlu0 %73, %v37
    %v75 = vpop.permute.xlu0 %74
    %76 = vset.pattern.permute.xlu0 0
    %77 = vperm.xlu0 %76, %v38
    %v78 = vpop.permute.xlu0 %77
    %79 = vset.pattern.permute.xlu0 0
    %80 = vperm.xlu0 %79, %v39
    %v81 = vpop.permute.xlu0 %80
    %82 = vset.pattern.permute.xlu0 0
    %83 = vperm.xlu0 %82, %v40
    %v84 = vpop.permute.xlu0 %83
    %85 = vset.pattern.permute.xlu0 0
    %86 = vperm.xlu0 %85, %v41
    %v87 = vpop.permute.xlu0 %86
    %88 = vset.pattern.permute.xlu0 0
    %89 = vperm.xlu0 %88, %v42
    %v90 = vpop.permute.xlu0 %89
    %91 = vset.pattern.permute.xlu0 0
    %92 = vperm.xlu0 %91, %v43
    %v93 = vpop.permute.xlu0 %92
    %vm94 = vcmp.eq.s32.totalorder %v48, %v45
    %vm95 = vcmp.eq.s32.totalorder %v51, %v45
    %vm96 = vcmp.eq.s32.totalorder %v54, %v45
    %vm97 = vcmp.eq.s32.totalorder %v57, %v45
    %vm98 = vcmp.eq.s32.totalorder %v60, %v45
    %vm99 = vcmp.eq.s32.totalorder %v63, %v45
    %vm100 = vcmp.eq.s32.totalorder %v66, %v45
    %vm101 = vcmp.eq.s32.totalorder %v69, %v45
    %vm102 = vcmp.eq.s32.totalorder %v72, %v45
    %vm103 = vcmp.eq.s32.totalorder %v75, %v45
    %vm104 = vcmp.eq.s32.totalorder %v78, %v45
    %vm105 = vcmp.eq.s32.totalorder %v81, %v45
    %vm106 = vcmp.eq.s32.totalorder %v84, %v45
    %vm107 = vcmp.eq.s32.totalorder %v87, %v45
    %vm108 = vcmp.eq.s32.totalorder %v90, %v45
    %vm109 = vcmp.eq.s32.totalorder %v93, %v45
    %v110 = vsel %vm94, 1, 0
    %v111 = vsel %vm95, 1, 0
    %v112 = vsel %vm96, 1, 0
    %v113 = vsel %vm97, 1, 0
    %v114 = vsel %vm98, 1, 0
    %v115 = vsel %vm99, 1, 0
    %v116 = vsel %vm100, 1, 0
    %v117 = vsel %vm101, 1, 0
    %v118 = vsel %vm102, 1, 0
    %v119 = vsel %vm103, 1, 0
    %v120 = vsel %vm104, 1, 0
    %v121 = vsel %vm105, 1, 0
    %v122 = vsel %vm106, 1, 0
    %v123 = vsel %vm107, 1, 0
    %v124 = vsel %vm108, 1, 0
    %v125 = vsel %vm109, 1, 0
    %v126 = vcvt.s32.f32 %v110
    %v127 = vcvt.s32.f32 %v111
    %v128 = vcvt.s32.f32 %v112
    %v129 = vcvt.s32.f32 %v113
    %v130 = vcvt.s32.f32 %v114
    %v131 = vcvt.s32.f32 %v115
    %v132 = vcvt.s32.f32 %v116
    %v133 = vcvt.s32.f32 %v117
    %v134 = vcvt.s32.f32 %v118
    %v135 = vcvt.s32.f32 %v119
    %v136 = vcvt.s32.f32 %v120
    %v137 = vcvt.s32.f32 %v121
    %v138 = vcvt.s32.f32 %v122
    %v139 = vcvt.s32.f32 %v123
    %v140 = vcvt.s32.f32 %v124
    %v141 = vcvt.s32.f32 %v125
    %v142 = vld [vmem:[#allocation4] sm:$0xff]
    %v143 = vld [vmem:[#allocation4 + $0x8] sm:$0xff]
    %v144 = vld [vmem:[#allocation4 + $0x10] sm:$0xff]
    %v145 = vld [vmem:[#allocation4 + $0x18] sm:$0xff]
    %v146 = vld [vmem:[#allocation4 + $0x20] sm:$0xff]
    %v147 = vld [vmem:[#allocation4 + $0x28] sm:$0xff]
    %v148 = vld [vmem:[#allocation4 + $0x30] sm:$0xff]
    %v149 = vld [vmem:[#allocation4 + $0x38] sm:$0xff]
    %v150 = vld [vmem:[#allocation4 + $0x40] sm:$0xff]
    %v151 = vld [vmem:[#allocation4 + $0x48] sm:$0xff]
    %v152 = vld [vmem:[#allocation4 + $0x50] sm:$0xff]
    %v153 = vld [vmem:[#allocation4 + $0x58] sm:$0xff]
    %v154 = vld [vmem:[#allocation4 + $0x60] sm:$0xff]
    %v155 = vld [vmem:[#allocation4 + $0x68] sm:$0xff]
    %v156 = vld [vmem:[#allocation4 + $0x70] sm:$0xff]
    %v157 = vld [vmem:[#allocation4 + $0x78] sm:$0xff]
    %v158 = vld [vmem:[#allocation4 + $0x80] sm:$0xff]
    %v159 = vld [vmem:[#allocation4 + $0x88] sm:$0xff]
    %v160 = vld [vmem:[#allocation4 + $0x90] sm:$0xff]
    %v161 = vld [vmem:[#allocation4 + $0x98] sm:$0xff]
    %v162 = vld [vmem:[#allocation4 + $0xa0] sm:$0xff]
    %vm163 = vcmask 457728
    %v165 = vsel %vm163, %v126, 0
    %v168 = vsel %vm163, %v127, 0
    %v171 = vsel %vm163, %v128, 0
    %v174 = vsel %vm163, %v129, 0
    %v177 = vsel %vm163, %v130, 0
    %v180 = vsel %vm163, %v131, 0
    %v183 = vsel %vm163, %v132, 0
    %v186 = vsel %vm163, %v133, 0
    %v189 = vsel %vm163, %v134, 0
    %v192 = vsel %vm163, %v135, 0
    %v195 = vsel %vm163, %v136, 0
    %v198 = vsel %vm163, %v137, 0
    %v201 = vsel %vm163, %v138, 0
    %v204 = vsel %vm163, %v139, 0
    %v207 = vsel %vm163, %v140, 0
    %v210 = vsel %vm163, %v141, 0
    %212 = vmatprep.subr.mxu0 %v143
    %213 = vmatpush1.msra.mxu0 %v142
    %214 = vmatprep.subr.mxu0 %v146
    %215 = vmatpush1.msra.mxu0 %v145
    %216 = vmatprep.subr.mxu0 %v149
    %217 = vmatpush1.msra.mxu0 %v148
    %218 = vmatprep.subr.mxu0 %v152
    %219 = vmatpush1.msra.mxu0 %v151
    %220 = vmatprep.subr.mxu0 %v155
    %221 = vmatpush1.msra.mxu0 %v154
    %222 = vmatprep.subr.mxu0 %v158
    %223 = vmatpush1.msra.mxu0 %v157
    %224 = vmatprep.subr.mxu0 %v161
    %225 = vmatpush1.msra.mxu0 %v160
    %226 = vmatprep.subr.mxu0 0.0
    %227 = vmatpush1.msra.mxu0 0.0
    %228 = vmatprep.subr.mxu0 0.0
    %229 = vmatpush1.msra.mxu0 0.0
    %230 = vmatprep.subr.mxu0 0.0
    %231 = vmatpush1.msra.mxu0 0.0
    %232 = vmatprep.subr.mxu0 0.0
    %233 = vmatpush1.msra.mxu0 0.0
    %234 = vmatprep.subr.mxu0 0.0
    %235 = vmatpush1.msra.mxu0 0.0
    %236 = vmatprep.subr.mxu0 0.0
    %237 = vmatpush1.msra.mxu0 0.0
    %238 = vmatprep.subr.mxu0 0.0
    %239 = vmatpush1.msra.mxu0 0.0
    %240 = vmatprep.subr.mxu0 0.0
    %241 = vmatpush1.msra.mxu0 0.0
    %242 = vmatprep.subr.mxu0 0.0
    %243 = vmatpush1.msra.mxu0 0.0
    %244 = vmatprep.subr.mxu0 0.0
    %245 = vmatpush1.msra.mxu0 0.0
    %246 = vmatprep.subr.mxu0 0.0
    %247 = vmatpush1.msra.mxu0 0.0
    %248 = vmatprep.subr.mxu0 0.0
    %249 = vmatpush1.msra.mxu0 0.0
    %250 = vmatprep.subr.mxu0 0.0
    %251 = vmatpush1.msra.mxu0 0.0
    %252 = vmatprep.subr.mxu0 0.0
    %253 = vmatpush1.msra.mxu0 0.0
    %254 = vmatprep.subr.mxu0 0.0
    %255 = vmatpush1.msra.mxu0 0.0
    %256 = vmatprep.subr.mxu0 0.0
    %257 = vmatpush1.msra.mxu0 0.0
    %258 = vmatprep.subr.mxu0 0.0
    %259 = vmatpush1.msra.mxu0 0.0
    %260 = vmatprep.subr.mxu0 0.0
    %261 = vmatpush1.msra.mxu0 0.0
    %262 = vmatprep.subr.mxu0 0.0
    %263 = vmatpush1.msra.mxu0 0.0
    %264 = vmatprep.subr.mxu0 0.0
    %265 = vmatpush1.msra.mxu0 0.0
    %266 = vmatprep.subr.mxu0 0.0
    %267 = vmatpush1.msra.mxu0 0.0
    %268 = vmatprep.subr.mxu0 0.0
    %269 = vmatpush1.msra.mxu0 0.0
    %270 = vmatprep.subr.mxu0 0.0
    %271 = vmatpush1.msra.mxu0 0.0
    %272 = vmatprep.subr.mxu0 0.0
    %273 = vmatpush1.msra.mxu0 0.0
    %274 = vmatprep.subr.mxu0 0.0
    %275 = vmatpush1.msra.mxu0 0.0
    %276 = vmatprep.mubr.f32.mxu0 0.0
    %277 = vmatmul.mubr.f32.gmra.mrb[0].mxu0 %v165
    %v278 = vpop.f32.mrb[0].mxu0
    %v279 = vadd.f32 0.0, %v278
    %v280 = vpop.f32.mrb[0].mxu0
    %v281 = vadd.f32 0.0, %v280
    %282 = vmatprep.mubr.f32.mxu0 0.0
    %283 = vmatmul.mubr.f32.gmra.mrb[0].mxu0 %v168
    %v284 = vpop.f32.mrb[0].mxu0
    %v285 = vadd.f32 0.0, %v284
    %v286 = vpop.f32.mrb[0].mxu0
    %v287 = vadd.f32 0.0, %v286
    %288 = vmatprep.mubr.f32.mxu0 0.0
    %289 = vmatmul.mubr.f32.gmra.mrb[0].mxu0 %v171
    %v290 = vpop.f32.mrb[0].mxu0
    %v291 = vadd.f32 0.0, %v290
    %v292 = vpop.f32.mrb[0].mxu0
    %v293 = vadd.f32 0.0, %v292
    %294 = vmatprep.mubr.f32.mxu0 0.0
    %295 = vmatmul.mubr.f32.gmra.mrb[0].mxu0 %v174
    %v296 = vpop.f32.mrb[0].mxu0
    %v297 = vadd.f32 0.0, %v296
    %v298 = vpop.f32.mrb[0].mxu0
    %v299 = vadd.f32 0.0, %v298
    %300 = vmatprep.mubr.f32.mxu0 0.0
    %301 = vmatmul.mubr.f32.gmra.mrb[0].mxu0 %v177
    %v302 = vpop.f32.mrb[0].mxu0
    %v303 = vadd.f32 0.0, %v302
    %v304 = vpop.f32.mrb[0].mxu0
    %v305 = vadd.f32 0.0, %v304
    %306 = vmatprep.mubr.f32.mxu0 0.0
    %307 = vmatmul.mubr.f32.gmra.mrb[0].mxu0 %v180
    %v308 = vpop.f32.mrb[0].mxu0
    %v309 = vadd.f32 0.0, %v308
    %v310 = vpop.f32.mrb[0].mxu0
    %v311 = vadd.f32 0.0, %v310
    %312 = vmatprep.mubr.f32.mxu0 0.0
    %313 = vmatmul.mubr.f32.gmra.mrb[0].mxu0 %v183
    %v314 = vpop.f32.mrb[0].mxu0
    %v315 = vadd.f32 0.0, %v314
    %v316 = vpop.f32.mrb[0].mxu0
    %v317 = vadd.f32 0.0, %v316
    %318 = vmatprep.mubr.f32.mxu0 0.0
    %319 = vmatmul.mubr.f32.gmra.mrb[0].mxu0 %v186
    %v320 = vpop.f32.mrb[0].mxu0
    %v321 = vadd.f32 0.0, %v320
    %v322 = vpop.f32.mrb[0].mxu0
    %v323 = vadd.f32 0.0, %v322
    %324 = vmatprep.mubr.f32.mxu0 0.0
    %325 = vmatmul.mubr.f32.gmra.mrb[0].mxu0 %v189
    %v326 = vpop.f32.mrb[0].mxu0
    %v327 = vadd.f32 0.0, %v326
    %v328 = vpop.f32.mrb[0].mxu0
    %v329 = vadd.f32 0.0, %v328
    %330 = vmatprep.mubr.f32.mxu0 0.0
    %331 = vmatmul.mubr.f32.gmra.mrb[0].mxu0 %v192
    %v332 = vpop.f32.mrb[0].mxu0
    %v333 = vadd.f32 0.0, %v332
    %v334 = vpop.f32.mrb[0].mxu0
    %v335 = vadd.f32 0.0, %v334
    %336 = vmatprep.mubr.f32.mxu0 0.0
    %337 = vmatmul.mubr.f32.gmra.mrb[0].mxu0 %v195
    %v338 = vpop.f32.mrb[0].mxu0
    %v339 = vadd.f32 0.0, %v338
    %v340 = vpop.f32.mrb[0].mxu0
    %v341 = vadd.f32 0.0, %v340
    %342 = vmatprep.mubr.f32.mxu0 0.0
    %343 = vmatmul.mubr.f32.gmra.mrb[0].mxu0 %v198
    %v344 = vpop.f32.mrb[0].mxu0
    %v345 = vadd.f32 0.0, %v344
    %v346 = vpop.f32.mrb[0].mxu0
    %v347 = vadd.f32 0.0, %v346
    %348 = vmatprep.mubr.f32.mxu0 0.0
    %349 = vmatmul.mubr.f32.gmra.mrb[0].mxu0 %v201
    %v350 = vpop.f32.mrb[0].mxu0
    %v351 = vadd.f32 0.0, %v350
    %v352 = vpop.f32.mrb[0].mxu0
    %v353 = vadd.f32 0.0, %v352
    %354 = vmatprep.mubr.f32.mxu0 0.0
    %355 = vmatmul.mubr.f32.gmra.mrb[0].mxu0 %v204
    %v356 = vpop.f32.mrb[0].mxu0
    %v357 = vadd.f32 0.0, %v356
    %v358 = vpop.f32.mrb[0].mxu0
    %v359 = vadd.f32 0.0, %v358
    %360 = vmatprep.mubr.f32.mxu0 0.0
    %361 = vmatmul.mubr.f32.gmra.mrb[0].mxu0 %v207
    %v362 = vpop.f32.mrb[0].mxu0
    %v363 = vadd.f32 0.0, %v362
    %v364 = vpop.f32.mrb[0].mxu0
    %v365 = vadd.f32 0.0, %v364
    %366 = vmatprep.mubr.f32.mxu0 0.0
    %367 = vmatmul.mubr.f32.gmra.mrb[0].mxu0 %v210
    %v368 = vpop.f32.mrb[0].mxu0
    %v369 = vadd.f32 0.0, %v368
    %v370 = vpop.f32.mrb[0].mxu0
    %v371 = vadd.f32 0.0, %v370
    %372 = vdwg.mxu0
    %373 = vmatprep.subr.mxu0 0.0
    %374 = vmatpush1.msra.mxu0 %v144
    %375 = vmatprep.subr.mxu0 0.0
    %376 = vmatpush1.msra.mxu0 %v147
    %377 = vmatprep.subr.mxu0 0.0
    %378 = vmatpush1.msra.mxu0 %v150
    %379 = vmatprep.subr.mxu0 0.0
    %380 = vmatpush1.msra.mxu0 %v153
    %381 = vmatprep.subr.mxu0 0.0
    %382 = vmatpush1.msra.mxu0 %v156
    %383 = vmatprep.subr.mxu0 0.0
    %384 = vmatpush1.msra.mxu0 %v159
    %385 = vmatprep.subr.mxu0 0.0
    %386 = vmatpush1.msra.mxu0 %v162
    %387 = vmatprep.subr.mxu0 0.0
    %388 = vmatpush1.msra.mxu0 0.0
    %389 = vmatprep.subr.mxu0 0.0
    %390 = vmatpush1.msra.mxu0 0.0
    %391 = vmatprep.subr.mxu0 0.0
    %392 = vmatpush1.msra.mxu0 0.0
    %393 = vmatprep.subr.mxu0 0.0
    %394 = vmatpush1.msra.mxu0 0.0
    %395 = vmatprep.subr.mxu0 0.0
    %396 = vmatpush1.msra.mxu0 0.0
    %397 = vmatprep.subr.mxu0 0.0
    %398 = vmatpush1.msra.mxu0 0.0
    %399 = vmatprep.subr.mxu0 0.0
    %400 = vmatpush1.msra.mxu0 0.0
    %401 = vmatprep.subr.mxu0 0.0
    %402 = vmatpush1.msra.mxu0 0.0
    %403 = vmatprep.subr.mxu0 0.0
    %404 = vmatpush1.msra.mxu0 0.0
    %405 = vmatprep.subr.mxu0 0.0
    %406 = vmatpush1.msra.mxu0 0.0
    %407 = vmatprep.subr.mxu0 0.0
    %408 = vmatpush1.msra.mxu0 0.0
    %409 = vmatprep.subr.mxu0 0.0
    %410 = vmatpush1.msra.mxu0 0.0
    %411 = vmatprep.subr.mxu0 0.0
    %412 = vmatpush1.msra.mxu0 0.0
    %413 = vmatprep.subr.mxu0 0.0
    %414 = vmatpush1.msra.mxu0 0.0
    %415 = vmatprep.subr.mxu0 0.0
    %416 = vmatpush1.msra.mxu0 0.0
    %417 = vmatprep.subr.mxu0 0.0
    %418 = vmatpush1.msra.mxu0 0.0
    %419 = vmatprep.subr.mxu0 0.0
    %420 = vmatpush1.msra.mxu0 0.0
    %421 = vmatprep.subr.mxu0 0.0
    %422 = vmatpush1.msra.mxu0 0.0
    %423 = vmatprep.subr.mxu0 0.0
    %424 = vmatpush1.msra.mxu0 0.0
    %425 = vmatprep.subr.mxu0 0.0
    %426 = vmatpush1.msra.mxu0 0.0
    %427 = vmatprep.subr.mxu0 0.0
    %428 = vmatpush1.msra.mxu0 0.0
    %429 = vmatprep.subr.mxu0 0.0
    %430 = vmatpush1.msra.mxu0 0.0
    %431 = vmatprep.subr.mxu0 0.0
    %432 = vmatpush1.msra.mxu0 0.0
    %433 = vmatprep.subr.mxu0 0.0
    %434 = vmatpush1.msra.mxu0 0.0
    %435 = vmatprep.subr.mxu0 0.0
    %436 = vmatpush1.msra.mxu0 0.0
    %437 = vmatprep.mubr.f32.mxu0 0.0
    %438 = vmatmul.mubr.f32.gmra.mrb[0].mxu0 %v165
    %v439 = vpop.f32.mrb[0].mxu0
    %v440 = vadd.f32 0.0, %v439
    %v441 = vpop.f32.mrb[0].mxu0
    %442 = vmatprep.mubr.f32.mxu0 0.0
    %443 = vmatmul.mubr.f32.gmra.mrb[0].mxu0 %v168
    %v444 = vpop.f32.mrb[0].mxu0
    %v445 = vadd.f32 0.0, %v444
    %v446 = vpop.f32.mrb[0].mxu0
    %447 = vmatprep.mubr.f32.mxu0 0.0
    %448 = vmatmul.mubr.f32.gmra.mrb[0].mxu0 %v171
    %v449 = vpop.f32.mrb[0].mxu0
    %v450 = vadd.f32 0.0, %v449
    %v451 = vpop.f32.mrb[0].mxu0
    %452 = vmatprep.mubr.f32.mxu0 0.0
    %453 = vmatmul.mubr.f32.gmra.mrb[0].mxu0 %v174
    %v454 = vpop.f32.mrb[0].mxu0
    %v455 = vadd.f32 0.0, %v454
    %v456 = vpop.f32.mrb[0].mxu0
    %457 = vmatprep.mubr.f32.mxu0 0.0
    %458 = vmatmul.mubr.f32.gmra.mrb[0].mxu0 %v177
    %v459 = vpop.f32.mrb[0].mxu0
    %v460 = vadd.f32 0.0, %v459
    %v461 = vpop.f32.mrb[0].mxu0
    %462 = vmatprep.mubr.f32.mxu0 0.0
    %463 = vmatmul.mubr.f32.gmra.mrb[0].mxu0 %v180
    %v464 = vpop.f32.mrb[0].mxu0
    %v465 = vadd.f32 0.0, %v464
    %v466 = vpop.f32.mrb[0].mxu0
    %467 = vmatprep.mubr.f32.mxu0 0.0
    %468 = vmatmul.mubr.f32.gmra.mrb[0].mxu0 %v183
    %v469 = vpop.f32.mrb[0].mxu0
    %v470 = vadd.f32 0.0, %v469
    %v471 = vpop.f32.mrb[0].mxu0
    %472 = vmatprep.mubr.f32.mxu0 0.0
    %473 = vmatmul.mubr.f32.gmra.mrb[0].mxu0 %v186
    %v474 = vpop.f32.mrb[0].mxu0
    %v475 = vadd.f32 0.0, %v474
    %v476 = vpop.f32.mrb[0].mxu0
    %477 = vmatprep.mubr.f32.mxu0 0.0
    %478 = vmatmul.mubr.f32.gmra.mrb[0].mxu0 %v189
    %v479 = vpop.f32.mrb[0].mxu0
    %v480 = vadd.f32 0.0, %v479
    %v481 = vpop.f32.mrb[0].mxu0
    %482 = vmatprep.mubr.f32.mxu0 0.0
    %483 = vmatmul.mubr.f32.gmra.mrb[0].mxu0 %v192
    %v484 = vpop.f32.mrb[0].mxu0
    %v485 = vadd.f32 0.0, %v484
    %v486 = vpop.f32.mrb[0].mxu0
    %487 = vmatprep.mubr.f32.mxu0 0.0
    %488 = vmatmul.mubr.f32.gmra.mrb[0].mxu0 %v195
    %v489 = vpop.f32.mrb[0].mxu0
    %v490 = vadd.f32 0.0, %v489
    %v491 = vpop.f32.mrb[0].mxu0
    %492 = vmatprep.mubr.f32.mxu0 0.0
    %493 = vmatmul.mubr.f32.gmra.mrb[0].mxu0 %v198
    %v494 = vpop.f32.mrb[0].mxu0
    %v495 = vadd.f32 0.0, %v494
    %v496 = vpop.f32.mrb[0].mxu0
    %497 = vmatprep.mubr.f32.mxu0 0.0
    %498 = vmatmul.mubr.f32.gmra.mrb[0].mxu0 %v201
    %v499 = vpop.f32.mrb[0].mxu0
    %v500 = vadd.f32 0.0, %v499
    %v501 = vpop.f32.mrb[0].mxu0
    %502 = vmatprep.mubr.f32.mxu0 0.0
    %503 = vmatmul.mubr.f32.gmra.mrb[0].mxu0 %v204
    %v504 = vpop.f32.mrb[0].mxu0
    %v505 = vadd.f32 0.0, %v504
    %v506 = vpop.f32.mrb[0].mxu0
    %507 = vmatprep.mubr.f32.mxu0 0.0
    %508 = vmatmul.mubr.f32.gmra.mrb[0].mxu0 %v207
    %v509 = vpop.f32.mrb[0].mxu0
    %v510 = vadd.f32 0.0, %v509
    %v511 = vpop.f32.mrb[0].mxu0
    %512 = vmatprep.mubr.f32.mxu0 0.0
    %513 = vmatmul.mubr.f32.gmra.mrb[0].mxu0 %v210
    %v514 = vpop.f32.mrb[0].mxu0
    %v515 = vadd.f32 0.0, %v514
    %v516 = vpop.f32.mrb[0].mxu0
    %517 = vdwg.mxu0
    %s518 = smul.u32 0, 49152
    %v519 = vlaneseq
    %v520 = vshrl.u32 %v519, 7
    %v521 = vadd.s32 %v520, 8
    %v522 = vadd.s32 %v520, 16
    %v523 = vadd.s32 %v520, 24
    %v524 = vadd.s32 %v520, 32
    %v525 = vadd.s32 %v520, 40
    %v526 = vadd.s32 %v520, 48
    %v527 = vadd.s32 %v520, 56
    %v528 = vadd.s32 %v520, 64
    %v529 = vadd.s32 %v520, 72
    %v530 = vadd.s32 %v520, 80
    %v531 = vadd.s32 %v520, 88
    %v532 = vadd.s32 %v520, 96
    %v533 = vadd.s32 %v520, 104
    %v534 = vadd.s32 %v520, 112
    %v535 = vadd.s32 %v520, 120
    %v536 = vadd.s32 %v45, 128
    %v537 = vadd.s32 %v45, 256
    %v538 = vmul.u32 %v520, 384
    %v539 = vmul.u32 %v521, 384
    %v540 = vmul.u32 %v522, 384
    %v541 = vmul.u32 %v523, 384
    %v542 = vmul.u32 %v524, 384
    %v543 = vmul.u32 %v525, 384
    %v544 = vmul.u32 %v526, 384
    %v545 = vmul.u32 %v527, 384
    %v546 = vmul.u32 %v528, 384
    %v547 = vmul.u32 %v529, 384
    %v548 = vmul.u32 %v530, 384
    %v549 = vmul.u32 %v531, 384
    %v550 = vmul.u32 %v532, 384
    %v551 = vmul.u32 %v533, 384
    %v552 = vmul.u32 %v534, 384
    %v553 = vmul.u32 %v535, 384
    %v554 = vstv %s518
    %v555 = vadd.s32 %v554, %v538
    %v556 = vadd.s32 %v554, %v539
    %v557 = vadd.s32 %v554, %v540
    %v558 = vadd.s32 %v554, %v541
    %v559 = vadd.s32 %v554, %v542
    %v560 = vadd.s32 %v554, %v543
    %v561 = vadd.s32 %v554, %v544
    %v562 = vadd.s32 %v554, %v545
    %v563 = vadd.s32 %v554, %v546
    %v564 = vadd.s32 %v554, %v547
    %v565 = vadd.s32 %v554, %v548
    %v566 = vadd.s32 %v554, %v549
    %v567 = vadd.s32 %v554, %v550
    %v568 = vadd.s32 %v554, %v551
    %v569 = vadd.s32 %v554, %v552
    %v570 = vadd.s32 %v554, %v553
    %v571 = vadd.s32 %v555, %v45
    %v572 = vadd.s32 %v555, %v536
    %v573 = vadd.s32 %v555, %v537
    %v574 = vadd.s32 %v556, %v45
    %v575 = vadd.s32 %v556, %v536
    %v576 = vadd.s32 %v556, %v537
    %v577 = vadd.s32 %v557, %v45
    %v578 = vadd.s32 %v557, %v536
    %v579 = vadd.s32 %v557, %v537
    %v580 = vadd.s32 %v558, %v45
    %v581 = vadd.s32 %v558, %v536
    %v582 = vadd.s32 %v558, %v537
    %v583 = vadd.s32 %v559, %v45
    %v584 = vadd.s32 %v559, %v536
    %v585 = vadd.s32 %v559, %v537
    %v586 = vadd.s32 %v560, %v45
    %v587 = vadd.s32 %v560, %v536
    %v588 = vadd.s32 %v560, %v537
    %v589 = vadd.s32 %v561, %v45
    %v590 = vadd.s32 %v561, %v536
    %v591 = vadd.s32 %v561, %v537
    %v592 = vadd.s32 %v562, %v45
    %v593 = vadd.s32 %v562, %v536
    %v594 = vadd.s32 %v562, %v537
    %v595 = vadd.s32 %v563, %v45
    %v596 = vadd.s32 %v563, %v536
    %v597 = vadd.s32 %v563, %v537
    %v598 = vadd.s32 %v564, %v45
    %v599 = vadd.s32 %v564, %v536
    %v600 = vadd.s32 %v564, %v537
    %v601 = vadd.s32 %v565, %v45
    %v602 = vadd.s32 %v565, %v536
    %v603 = vadd.s32 %v565, %v537
    %v604 = vadd.s32 %v566, %v45
    %v605 = vadd.s32 %v566, %v536
    %v606 = vadd.s32 %v566, %v537
    %v607 = vadd.s32 %v567, %v45
    %v608 = vadd.s32 %v567, %v536
    %v609 = vadd.s32 %v567, %v537
    %v610 = vadd.s32 %v568, %v45
    %v611 = vadd.s32 %v568, %v536
    %v612 = vadd.s32 %v568, %v537
    %v613 = vadd.s32 %v569, %v45
    %v614 = vadd.s32 %v569, %v536
    %v615 = vadd.s32 %v569, %v537
    %v616 = vadd.s32 %v570, %v45
    %v617 = vadd.s32 %v570, %v536
    %v618 = vadd.s32 %v570, %v537
    %s619 = sld [smem:[#allocation3]]
    %s620 = smul.u32 %s619, 2654435769
    %v621 = vstv %s620
    %v622 = vadd.s32 %v571, %v621
    %v623 = vadd.s32 %v572, %v621
    %v624 = vadd.s32 %v573, %v621
    %v625 = vadd.s32 %v574, %v621
    %v626 = vadd.s32 %v575, %v621
    %v627 = vadd.s32 %v576, %v621
    %v628 = vadd.s32 %v577, %v621
    %v629 = vadd.s32 %v578, %v621
    %v630 = vadd.s32 %v579, %v621
    %v631 = vadd.s32 %v580, %v621
    %v632 = vadd.s32 %v581, %v621
    %v633 = vadd.s32 %v582, %v621
    %v634 = vadd.s32 %v583, %v621
    %v635 = vadd.s32 %v584, %v621
    %v636 = vadd.s32 %v585, %v621
    %v637 = vadd.s32 %v586, %v621
    %v638 = vadd.s32 %v587, %v621
    %v639 = vadd.s32 %v588, %v621
    %v640 = vadd.s32 %v589, %v621
    %v641 = vadd.s32 %v590, %v621
    %v642 = vadd.s32 %v591, %v621
    %v643 = vadd.s32 %v592, %v621
    %v644 = vadd.s32 %v593, %v621
    %v645 = vadd.s32 %v594, %v621
    %v646 = vadd.s32 %v595, %v621
    %v647 = vadd.s32 %v596, %v621
    %v648 = vadd.s32 %v597, %v621
    %v649 = vadd.s32 %v598, %v621
    %v650 = vadd.s32 %v599, %v621
    %v651 = vadd.s32 %v600, %v621
    %v652 = vadd.s32 %v601, %v621
    %v653 = vadd.s32 %v602, %v621
    %v654 = vadd.s32 %v603, %v621
    %v655 = vadd.s32 %v604, %v621
    %v656 = vadd.s32 %v605, %v621
    %v657 = vadd.s32 %v606, %v621
    %v658 = vadd.s32 %v607, %v621
    %v659 = vadd.s32 %v608, %v621
    %v660 = vadd.s32 %v609, %v621
    %v661 = vadd.s32 %v610, %v621
    %v662 = vadd.s32 %v611, %v621
    %v663 = vadd.s32 %v612, %v621
    %v664 = vadd.s32 %v613, %v621
    %v665 = vadd.s32 %v614, %v621
    %v666 = vadd.s32 %v615, %v621
    %v667 = vadd.s32 %v616, %v621
    %v668 = vadd.s32 %v617, %v621
    %v669 = vadd.s32 %v618, %v621
    %v670 = vshrl.u32 %v622, 16
    %v671 = vshrl.u32 %v623, 16
    %v672 = vshrl.u32 %v624, 16
    %v673 = vshrl.u32 %v625, 16
    %v674 = vshrl.u32 %v626, 16
    %v675 = vshrl.u32 %v627, 16
    %v676 = vshrl.u32 %v628, 16
    %v677 = vshrl.u32 %v629, 16
    %v678 = vshrl.u32 %v630, 16
    %v679 = vshrl.u32 %v631, 16
    %v680 = vshrl.u32 %v632, 16
    %v681 = vshrl.u32 %v633, 16
    %v682 = vshrl.u32 %v634, 16
    %v683 = vshrl.u32 %v635, 16
    %v684 = vshrl.u32 %v636, 16
    %v685 = vshrl.u32 %v637, 16
    %v686 = vshrl.u32 %v638, 16
    %v687 = vshrl.u32 %v639, 16
    %v688 = vshrl.u32 %v640, 16
    %v689 = vshrl.u32 %v641, 16
    %v690 = vshrl.u32 %v642, 16
    %v691 = vshrl.u32 %v643, 16
    %v692 = vshrl.u32 %v644, 16
    %v693 = vshrl.u32 %v645, 16
    %v694 = vshrl.u32 %v646, 16
    %v695 = vshrl.u32 %v647, 16
    %v696 = vshrl.u32 %v648, 16
    %v697 = vshrl.u32 %v649, 16
    %v698 = vshrl.u32 %v650, 16
    %v699 = vshrl.u32 %v651, 16
    %v700 = vshrl.u32 %v652, 16
    %v701 = vshrl.u32 %v653, 16
    %v702 = vshrl.u32 %v654, 16
    %v703 = vshrl.u32 %v655, 16
    %v704 = vshrl.u32 %v656, 16
    %v705 = vshrl.u32 %v657, 16
    %v706 = vshrl.u32 %v658, 16
    %v707 = vshrl.u32 %v659, 16
    %v708 = vshrl.u32 %v660, 16
    %v709 = vshrl.u32 %v661, 16
    %v710 = vshrl.u32 %v662, 16
    %v711 = vshrl.u32 %v663, 16
    %v712 = vshrl.u32 %v664, 16
    %v713 = vshrl.u32 %v665, 16
    %v714 = vshrl.u32 %v666, 16
    %v715 = vshrl.u32 %v667, 16
    %v716 = vshrl.u32 %v668, 16
    %v717 = vshrl.u32 %v669, 16
    %v718 = vxor.u32 %v622, %v670
    %v719 = vxor.u32 %v623, %v671
    %v720 = vxor.u32 %v624, %v672
    %v721 = vxor.u32 %v625, %v673
    %v722 = vxor.u32 %v626, %v674
    %v723 = vxor.u32 %v627, %v675
    %v724 = vxor.u32 %v628, %v676
    %v725 = vxor.u32 %v629, %v677
    %v726 = vxor.u32 %v630, %v678
    %v727 = vxor.u32 %v631, %v679
    %v728 = vxor.u32 %v632, %v680
    %v729 = vxor.u32 %v633, %v681
    %v730 = vxor.u32 %v634, %v682
    %v731 = vxor.u32 %v635, %v683
    %v732 = vxor.u32 %v636, %v684
    %v733 = vxor.u32 %v637, %v685
    %v734 = vxor.u32 %v638, %v686
    %v735 = vxor.u32 %v639, %v687
    %v736 = vxor.u32 %v640, %v688
    %v737 = vxor.u32 %v641, %v689
    %v738 = vxor.u32 %v642, %v690
    %v739 = vxor.u32 %v643, %v691
    %v740 = vxor.u32 %v644, %v692
    %v741 = vxor.u32 %v645, %v693
    %v742 = vxor.u32 %v646, %v694
    %v743 = vxor.u32 %v647, %v695
    %v744 = vxor.u32 %v648, %v696
    %v745 = vxor.u32 %v649, %v697
    %v746 = vxor.u32 %v650, %v698
    %v747 = vxor.u32 %v651, %v699
    %v748 = vxor.u32 %v652, %v700
    %v749 = vxor.u32 %v653, %v701
    %v750 = vxor.u32 %v654, %v702
    %v751 = vxor.u32 %v655, %v703
    %v752 = vxor.u32 %v656, %v704
    %v753 = vxor.u32 %v657, %v705
    %v754 = vxor.u32 %v658, %v706
    %v755 = vxor.u32 %v659, %v707
    %v756 = vxor.u32 %v660, %v708
    %v757 = vxor.u32 %v661, %v709
    %v758 = vxor.u32 %v662, %v710
    %v759 = vxor.u32 %v663, %v711
    %v760 = vxor.u32 %v664, %v712
    %v761 = vxor.u32 %v665, %v713
    %v762 = vxor.u32 %v666, %v714
    %v763 = vxor.u32 %v667, %v715
    %v764 = vxor.u32 %v668, %v716
    %v765 = vxor.u32 %v669, %v717
    %v766 = vmul.u32 %v718, 2146121005
    %v767 = vmul.u32 %v719, 2146121005
    %v768 = vmul.u32 %v720, 2146121005
    %v769 = vmul.u32 %v721, 2146121005
    %v770 = vmul.u32 %v722, 2146121005
    %v771 = vmul.u32 %v723, 2146121005
    %v772 = vmul.u32 %v724, 2146121005
    %v773 = vmul.u32 %v725, 2146121005
    %v774 = vmul.u32 %v726, 2146121005
    %v775 = vmul.u32 %v727, 2146121005
    %v776 = vmul.u32 %v728, 2146121005
    %v777 = vmul.u32 %v729, 2146121005
    %v778 = vmul.u32 %v730, 2146121005
    %v779 = vmul.u32 %v731, 2146121005
    %v780 = vmul.u32 %v732, 2146121005
    %v781 = vmul.u32 %v733, 2146121005
    %v782 = vmul.u32 %v734, 2146121005
    %v783 = vmul.u32 %v735, 2146121005
    %v784 = vmul.u32 %v736, 2146121005
    %v785 = vmul.u32 %v737, 2146121005
    %v786 = vmul.u32 %v738, 2146121005
    %v787 = vmul.u32 %v739, 2146121005
    %v788 = vmul.u32 %v740, 2146121005
    %v789 = vmul.u32 %v741, 2146121005
    %v790 = vmul.u32 %v742, 2146121005
    %v791 = vmul.u32 %v743, 2146121005
    %v792 = vmul.u32 %v744, 2146121005
    %v793 = vmul.u32 %v745, 2146121005
    %v794 = vmul.u32 %v746, 2146121005
    %v795 = vmul.u32 %v747, 2146121005
    %v796 = vmul.u32 %v748, 2146121005
    %v797 = vmul.u32 %v749, 2146121005
    %v798 = vmul.u32 %v750, 2146121005
    %v799 = vmul.u32 %v751, 2146121005
    %v800 = vmul.u32 %v752, 2146121005
    %v801 = vmul.u32 %v753, 2146121005
    %v802 = vmul.u32 %v754, 2146121005
    %v803 = vmul.u32 %v755, 2146121005
    %v804 = vmul.u32 %v756, 2146121005
    %v805 = vmul.u32 %v757, 2146121005
    %v806 = vmul.u32 %v758, 2146121005
    %v807 = vmul.u32 %v759, 2146121005
    %v808 = vmul.u32 %v760, 2146121005
    %v809 = vmul.u32 %v761, 2146121005
    %v810 = vmul.u32 %v762, 2146121005
    %v811 = vmul.u32 %v763, 2146121005
    %v812 = vmul.u32 %v764, 2146121005
    %v813 = vmul.u32 %v765, 2146121005
    %v814 = vshrl.u32 %v766, 15
    %v815 = vshrl.u32 %v767, 15
    %v816 = vshrl.u32 %v768, 15
    %v817 = vshrl.u32 %v769, 15
    %v818 = vshrl.u32 %v770, 15
    %v819 = vshrl.u32 %v771, 15
    %v820 = vshrl.u32 %v772, 15
    %v821 = vshrl.u32 %v773, 15
    %v822 = vshrl.u32 %v774, 15
    %v823 = vshrl.u32 %v775, 15
    %v824 = vshrl.u32 %v776, 15
    %v825 = vshrl.u32 %v777, 15
    %v826 = vshrl.u32 %v778, 15
    %v827 = vshrl.u32 %v779, 15
    %v828 = vshrl.u32 %v780, 15
    %v829 = vshrl.u32 %v781, 15
    %v830 = vshrl.u32 %v782, 15
    %v831 = vshrl.u32 %v783, 15
    %v832 = vshrl.u32 %v784, 15
    %v833 = vshrl.u32 %v785, 15
    %v834 = vshrl.u32 %v786, 15
    %v835 = vshrl.u32 %v787, 15
    %v836 = vshrl.u32 %v788, 15
    %v837 = vshrl.u32 %v789, 15
    %v838 = vshrl.u32 %v790, 15
    %v839 = vshrl.u32 %v791, 15
    %v840 = vshrl.u32 %v792, 15
    %v841 = vshrl.u32 %v793, 15
    %v842 = vshrl.u32 %v794, 15
    %v843 = vshrl.u32 %v795, 15
    %v844 = vshrl.u32 %v796, 15
    %v845 = vshrl.u32 %v797, 15
    %v846 = vshrl.u32 %v798, 15
    %v847 = vshrl.u32 %v799, 15
    %v848 = vshrl.u32 %v800, 15
    %v849 = vshrl.u32 %v801, 15
    %v850 = vshrl.u32 %v802, 15
    %v851 = vshrl.u32 %v803, 15
    %v852 = vshrl.u32 %v804, 15
    %v853 = vshrl.u32 %v805, 15
    %v854 = vshrl.u32 %v806, 15
    %v855 = vshrl.u32 %v807, 15
    %v856 = vshrl.u32 %v808, 15
    %v857 = vshrl.u32 %v809, 15
    %v858 = vshrl.u32 %v810, 15
    %v859 = vshrl.u32 %v811, 15
    %v860 = vshrl.u32 %v812, 15
    %v861 = vshrl.u32 %v813, 15
    %v862 = vxor.u32 %v766, %v814
    %v863 = vxor.u32 %v767, %v815
    %v864 = vxor.u32 %v768, %v816
    %v865 = vxor.u32 %v769, %v817
    %v866 = vxor.u32 %v770, %v818
    %v867 = vxor.u32 %v771, %v819
    %v868 = vxor.u32 %v772, %v820
    %v869 = vxor.u32 %v773, %v821
    %v870 = vxor.u32 %v774, %v822
    %v871 = vxor.u32 %v775, %v823
    %v872 = vxor.u32 %v776, %v824
    %v873 = vxor.u32 %v777, %v825
    %v874 = vxor.u32 %v778, %v826
    %v875 = vxor.u32 %v779, %v827
    %v876 = vxor.u32 %v780, %v828
    %v877 = vxor.u32 %v781, %v829
    %v878 = vxor.u32 %v782, %v830
    %v879 = vxor.u32 %v783, %v831
    %v880 = vxor.u32 %v784, %v832
    %v881 = vxor.u32 %v785, %v833
    %v882 = vxor.u32 %v786, %v834
    %v883 = vxor.u32 %v787, %v835
    %v884 = vxor.u32 %v788, %v836
    %v885 = vxor.u32 %v789, %v837
    %v886 = vxor.u32 %v790, %v838
    %v887 = vxor.u32 %v791, %v839
    %v888 = vxor.u32 %v792, %v840
    %v889 = vxor.u32 %v793, %v841
    %v890 = vxor.u32 %v794, %v842
    %v891 = vxor.u32 %v795, %v843
    %v892 = vxor.u32 %v796, %v844
    %v893 = vxor.u32 %v797, %v845
    %v894 = vxor.u32 %v798, %v846
    %v895 = vxor.u32 %v799, %v847
    %v896 = vxor.u32 %v800, %v848
    %v897 = vxor.u32 %v801, %v849
    %v898 = vxor.u32 %v802, %v850
    %v899 = vxor.u32 %v803, %v851
    %v900 = vxor.u32 %v804, %v852
    %v901 = vxor.u32 %v805, %v853
    %v902 = vxor.u32 %v806, %v854
    %v903 = vxor.u32 %v807, %v855
    %v904 = vxor.u32 %v808, %v856
    %v905 = vxor.u32 %v809, %v857
    %v906 = vxor.u32 %v810, %v858
    %v907 = vxor.u32 %v811, %v859
    %v908 = vxor.u32 %v812, %v860
    %v909 = vxor.u32 %v813, %v861
    %v910 = vmul.u32 %v862, 2221713035
    %v911 = vmul.u32 %v863, 2221713035
    %v912 = vmul.u32 %v864, 2221713035
    %v913 = vmul.u32 %v865, 2221713035
    %v914 = vmul.u32 %v866, 2221713035
    %v915 = vmul.u32 %v867, 2221713035
    %v916 = vmul.u32 %v868, 2221713035
    %v917 = vmul.u32 %v869, 2221713035
    %v918 = vmul.u32 %v870, 2221713035
    %v919 = vmul.u32 %v871, 2221713035
    %v920 = vmul.u32 %v872, 2221713035
    %v921 = vmul.u32 %v873, 2221713035
    %v922 = vmul.u32 %v874, 2221713035
    %v923 = vmul.u32 %v875, 2221713035
    %v924 = vmul.u32 %v876, 2221713035
    %v925 = vmul.u32 %v877, 2221713035
    %v926 = vmul.u32 %v878, 2221713035
    %v927 = vmul.u32 %v879, 2221713035
    %v928 = vmul.u32 %v880, 2221713035
    %v929 = vmul.u32 %v881, 2221713035
    %v930 = vmul.u32 %v882, 2221713035
    %v931 = vmul.u32 %v883, 2221713035
    %v932 = vmul.u32 %v884, 2221713035
    %v933 = vmul.u32 %v885, 2221713035
    %v934 = vmul.u32 %v886, 2221713035
    %v935 = vmul.u32 %v887, 2221713035
    %v936 = vmul.u32 %v888, 2221713035
    %v937 = vmul.u32 %v889, 2221713035
    %v938 = vmul.u32 %v890, 2221713035
    %v939 = vmul.u32 %v891, 2221713035
    %v940 = vmul.u32 %v892, 2221713035
    %v941 = vmul.u32 %v893, 2221713035
    %v942 = vmul.u32 %v894, 2221713035
    %v943 = vmul.u32 %v895, 2221713035
    %v944 = vmul.u32 %v896, 2221713035
    %v945 = vmul.u32 %v897, 2221713035
    %v946 = vmul.u32 %v898, 2221713035
    %v947 = vmul.u32 %v899, 2221713035
    %v948 = vmul.u32 %v900, 2221713035
    %v949 = vmul.u32 %v901, 2221713035
    %v950 = vmul.u32 %v902, 2221713035
    %v951 = vmul.u32 %v903, 2221713035
    %v952 = vmul.u32 %v904, 2221713035
    %v953 = vmul.u32 %v905, 2221713035
    %v954 = vmul.u32 %v906, 2221713035
    %v955 = vmul.u32 %v907, 2221713035
    %v956 = vmul.u32 %v908, 2221713035
    %v957 = vmul.u32 %v909, 2221713035
    %v958 = vshrl.u32 %v910, 16
    %v959 = vshrl.u32 %v911, 16
    %v960 = vshrl.u32 %v912, 16
    %v961 = vshrl.u32 %v913, 16
    %v962 = vshrl.u32 %v914, 16
    %v963 = vshrl.u32 %v915, 16
    %v964 = vshrl.u32 %v916, 16
    %v965 = vshrl.u32 %v917, 16
    %v966 = vshrl.u32 %v918, 16
    %v967 = vshrl.u32 %v919, 16
    %v968 = vshrl.u32 %v920, 16
    %v969 = vshrl.u32 %v921, 16
    %v970 = vshrl.u32 %v922, 16
    %v971 = vshrl.u32 %v923, 16
    %v972 = vshrl.u32 %v924, 16
    %v973 = vshrl.u32 %v925, 16
    %v974 = vshrl.u32 %v926, 16
    %v975 = vshrl.u32 %v927, 16
    %v976 = vshrl.u32 %v928, 16
    %v977 = vshrl.u32 %v929, 16
    %v978 = vshrl.u32 %v930, 16
    %v979 = vshrl.u32 %v931, 16
    %v980 = vshrl.u32 %v932, 16
    %v981 = vshrl.u32 %v933, 16
    %v982 = vshrl.u32 %v934, 16
    %v983 = vshrl.u32 %v935, 16
    %v984 = vshrl.u32 %v936, 16
    %v985 = vshrl.u32 %v937, 16
    %v986 = vshrl.u32 %v938, 16
    %v987 = vshrl.u32 %v939, 16
    %v988 = vshrl.u32 %v940, 16
    %v989 = vshrl.u32 %v941, 16
    %v990 = vshrl.u32 %v942, 16
    %v991 = vshrl.u32 %v943, 16
    %v992 = vshrl.u32 %v944, 16
    %v993 = vshrl.u32 %v945, 16
    %v994 = vshrl.u32 %v946, 16
    %v995 = vshrl.u32 %v947, 16
    %v996 = vshrl.u32 %v948, 16
    %v997 = vshrl.u32 %v949, 16
    %v998 = vshrl.u32 %v950, 16
    %v999 = vshrl.u32 %v951, 16
    %v1000 = vshrl.u32 %v952, 16
    %v1001 = vshrl.u32 %v953, 16
    %v1002 = vshrl.u32 %v954, 16
    %v1003 = vshrl.u32 %v955, 16
    %v1004 = vshrl.u32 %v956, 16
    %v1005 = vshrl.u32 %v957, 16
    %v1006 = vxor.u32 %v910, %v958
    %v1007 = vxor.u32 %v911, %v959
    %v1008 = vxor.u32 %v912, %v960
    %v1009 = vxor.u32 %v913, %v961
    %v1010 = vxor.u32 %v914, %v962
    %v1011 = vxor.u32 %v915, %v963
    %v1012 = vxor.u32 %v916, %v964
    %v1013 = vxor.u32 %v917, %v965
    %v1014 = vxor.u32 %v918, %v966
    %v1015 = vxor.u32 %v919, %v967
    %v1016 = vxor.u32 %v920, %v968
    %v1017 = vxor.u32 %v921, %v969
    %v1018 = vxor.u32 %v922, %v970
    %v1019 = vxor.u32 %v923, %v971
    %v1020 = vxor.u32 %v924, %v972
    %v1021 = vxor.u32 %v925, %v973
    %v1022 = vxor.u32 %v926, %v974
    %v1023 = vxor.u32 %v927, %v975
    %v1024 = vxor.u32 %v928, %v976
    %v1025 = vxor.u32 %v929, %v977
    %v1026 = vxor.u32 %v930, %v978
    %v1027 = vxor.u32 %v931, %v979
    %v1028 = vxor.u32 %v932, %v980
    %v1029 = vxor.u32 %v933, %v981
    %v1030 = vxor.u32 %v934, %v982
    %v1031 = vxor.u32 %v935, %v983
    %v1032 = vxor.u32 %v936, %v984
    %v1033 = vxor.u32 %v937, %v985
    %v1034 = vxor.u32 %v938, %v986
    %v1035 = vxor.u32 %v939, %v987
    %v1036 = vxor.u32 %v940, %v988
    %v1037 = vxor.u32 %v941, %v989
    %v1038 = vxor.u32 %v942, %v990
    %v1039 = vxor.u32 %v943, %v991
    %v1040 = vxor.u32 %v944, %v992
    %v1041 = vxor.u32 %v945, %v993
    %v1042 = vxor.u32 %v946, %v994
    %v1043 = vxor.u32 %v947, %v995
    %v1044 = vxor.u32 %v948, %v996
    %v1045 = vxor.u32 %v949, %v997
    %v1046 = vxor.u32 %v950, %v998
    %v1047 = vxor.u32 %v951, %v999
    %v1048 = vxor.u32 %v952, %v1000
    %v1049 = vxor.u32 %v953, %v1001
    %v1050 = vxor.u32 %v954, %v1002
    %v1051 = vxor.u32 %v955, %v1003
    %v1052 = vxor.u32 %v956, %v1004
    %v1053 = vxor.u32 %v957, %v1005
    %v1054 = vshrl.u32 %v1006, 8
    %v1055 = vshrl.u32 %v1007, 8
    %v1056 = vshrl.u32 %v1008, 8
    %v1057 = vshrl.u32 %v1009, 8
    %v1058 = vshrl.u32 %v1010, 8
    %v1059 = vshrl.u32 %v1011, 8
    %v1060 = vshrl.u32 %v1012, 8
    %v1061 = vshrl.u32 %v1013, 8
    %v1062 = vshrl.u32 %v1014, 8
    %v1063 = vshrl.u32 %v1015, 8
    %v1064 = vshrl.u32 %v1016, 8
    %v1065 = vshrl.u32 %v1017, 8
    %v1066 = vshrl.u32 %v1018, 8
    %v1067 = vshrl.u32 %v1019, 8
    %v1068 = vshrl.u32 %v1020, 8
    %v1069 = vshrl.u32 %v1021, 8
    %v1070 = vshrl.u32 %v1022, 8
    %v1071 = vshrl.u32 %v1023, 8
    %v1072 = vshrl.u32 %v1024, 8
    %v1073 = vshrl.u32 %v1025, 8
    %v1074 = vshrl.u32 %v1026, 8
    %v1075 = vshrl.u32 %v1027, 8
    %v1076 = vshrl.u32 %v1028, 8
    %v1077 = vshrl.u32 %v1029, 8
    %v1078 = vshrl.u32 %v1030, 8
    %v1079 = vshrl.u32 %v1031, 8
    %v1080 = vshrl.u32 %v1032, 8
    %v1081 = vshrl.u32 %v1033, 8
    %v1082 = vshrl.u32 %v1034, 8
    %v1083 = vshrl.u32 %v1035, 8
    %v1084 = vshrl.u32 %v1036, 8
    %v1085 = vshrl.u32 %v1037, 8
    %v1086 = vshrl.u32 %v1038, 8
    %v1087 = vshrl.u32 %v1039, 8
    %v1088 = vshrl.u32 %v1040, 8
    %v1089 = vshrl.u32 %v1041, 8
    %v1090 = vshrl.u32 %v1042, 8
    %v1091 = vshrl.u32 %v1043, 8
    %v1092 = vshrl.u32 %v1044, 8
    %v1093 = vshrl.u32 %v1045, 8
    %v1094 = vshrl.u32 %v1046, 8
    %v1095 = vshrl.u32 %v1047, 8
    %v1096 = vshrl.u32 %v1048, 8
    %v1097 = vshrl.u32 %v1049, 8
    %v1098 = vshrl.u32 %v1050, 8
    %v1099 = vshrl.u32 %v1051, 8
    %v1100 = vshrl.u32 %v1052, 8
    %v1101 = vshrl.u32 %v1053, 8
    %vm1102 = vcmp.ge.s32.totalorder %v1054, 4194304
    %vm1103 = vcmp.ge.s32.totalorder %v1055, 4194304
    %vm1104 = vcmp.ge.s32.totalorder %v1056, 4194304
    %vm1105 = vcmp.ge.s32.totalorder %v1057, 4194304
    %vm1106 = vcmp.ge.s32.totalorder %v1058, 4194304
    %vm1107 = vcmp.ge.s32.totalorder %v1059, 4194304
    %vm1108 = vcmp.ge.s32.totalorder %v1060, 4194304
    %vm1109 = vcmp.ge.s32.totalorder %v1061, 4194304
    %vm1110 = vcmp.ge.s32.totalorder %v1062, 4194304
    %vm1111 = vcmp.ge.s32.totalorder %v1063, 4194304
    %vm1112 = vcmp.ge.s32.totalorder %v1064, 4194304
    %vm1113 = vcmp.ge.s32.totalorder %v1065, 4194304
    %vm1114 = vcmp.ge.s32.totalorder %v1066, 4194304
    %vm1115 = vcmp.ge.s32.totalorder %v1067, 4194304
    %vm1116 = vcmp.ge.s32.totalorder %v1068, 4194304
    %vm1117 = vcmp.ge.s32.totalorder %v1069, 4194304
    %vm1118 = vcmp.ge.s32.totalorder %v1070, 4194304
    %vm1119 = vcmp.ge.s32.totalorder %v1071, 4194304
    %vm1120 = vcmp.ge.s32.totalorder %v1072, 4194304
    %vm1121 = vcmp.ge.s32.totalorder %v1073, 4194304
    %vm1122 = vcmp.ge.s32.totalorder %v1074, 4194304
    %vm1123 = vcmp.ge.s32.totalorder %v1075, 4194304
    %vm1124 = vcmp.ge.s32.totalorder %v1076, 4194304
    %vm1125 = vcmp.ge.s32.totalorder %v1077, 4194304
    %vm1126 = vcmp.ge.s32.totalorder %v1078, 4194304
    %vm1127 = vcmp.ge.s32.totalorder %v1079, 4194304
    %vm1128 = vcmp.ge.s32.totalorder %v1080, 4194304
    %vm1129 = vcmp.ge.s32.totalorder %v1081, 4194304
    %vm1130 = vcmp.ge.s32.totalorder %v1082, 4194304
    %vm1131 = vcmp.ge.s32.totalorder %v1083, 4194304
    %vm1132 = vcmp.ge.s32.totalorder %v1084, 4194304
    %vm1133 = vcmp.ge.s32.totalorder %v1085, 4194304
    %vm1134 = vcmp.ge.s32.totalorder %v1086, 4194304
    %vm1135 = vcmp.ge.s32.totalorder %v1087, 4194304
    %vm1136 = vcmp.ge.s32.totalorder %v1088, 4194304
    %vm1137 = vcmp.ge.s32.totalorder %v1089, 4194304
    %vm1138 = vcmp.ge.s32.totalorder %v1090, 4194304
    %vm1139 = vcmp.ge.s32.totalorder %v1091, 4194304
    %vm1140 = vcmp.ge.s32.totalorder %v1092, 4194304
    %vm1141 = vcmp.ge.s32.totalorder %v1093, 4194304
    %vm1142 = vcmp.ge.s32.totalorder %v1094, 4194304
    %vm1143 = vcmp.ge.s32.totalorder %v1095, 4194304
    %vm1144 = vcmp.ge.s32.totalorder %v1096, 4194304
    %vm1145 = vcmp.ge.s32.totalorder %v1097, 4194304
    %vm1146 = vcmp.ge.s32.totalorder %v1098, 4194304
    %vm1147 = vcmp.ge.s32.totalorder %v1099, 4194304
    %vm1148 = vcmp.ge.s32.totalorder %v1100, 4194304
    %vm1149 = vcmp.ge.s32.totalorder %v1101, 4194304
    %v1150 = vmul.f32 %v279, 1.3333334
    %v1151 = vmul.f32 %v281, 1.3333334
    %v1152 = vmul.f32 %v440, 1.3333334
    %v1153 = vmul.f32 %v285, 1.3333334
    %v1154 = vmul.f32 %v287, 1.3333334
    %v1155 = vmul.f32 %v445, 1.3333334
    %v1156 = vmul.f32 %v291, 1.3333334
    %v1157 = vmul.f32 %v293, 1.3333334
    %v1158 = vmul.f32 %v450, 1.3333334
    %v1159 = vmul.f32 %v297, 1.3333334
    %v1160 = vmul.f32 %v299, 1.3333334
    %v1161 = vmul.f32 %v455, 1.3333334
    %v1162 = vmul.f32 %v303, 1.3333334
    %v1163 = vmul.f32 %v305, 1.3333334
    %v1164 = vmul.f32 %v460, 1.3333334
    %v1165 = vmul.f32 %v309, 1.3333334
    %v1166 = vmul.f32 %v311, 1.3333334
    %v1167 = vmul.f32 %v465, 1.3333334
    %v1168 = vmul.f32 %v315, 1.3333334
    %v1169 = vmul.f32 %v317, 1.3333334
    %v1170 = vmul.f32 %v470, 1.3333334
    %v1171 = vmul.f32 %v321, 1.3333334
    %v1172 = vmul.f32 %v323, 1.3333334
    %v1173 = vmul.f32 %v475, 1.3333334
    %v1174 = vmul.f32 %v327, 1.3333334
    %v1175 = vmul.f32 %v329, 1.3333334
    %v1176 = vmul.f32 %v480, 1.3333334
    %v1177 = vmul.f32 %v333, 1.3333334
    %v1178 = vmul.f32 %v335, 1.3333334
    %v1179 = vmul.f32 %v485, 1.3333334
    %v1180 = vmul.f32 %v339, 1.3333334
    %v1181 = vmul.f32 %v341, 1.3333334
    %v1182 = vmul.f32 %v490, 1.3333334
    %v1183 = vmul.f32 %v345, 1.3333334
    %v1184 = vmul.f32 %v347, 1.3333334
    %v1185 = vmul.f32 %v495, 1.3333334
    %v1186 = vmul.f32 %v351, 1.3333334
    %v1187 = vmul.f32 %v353, 1.3333334
    %v1188 = vmul.f32 %v500, 1.3333334
    %v1189 = vmul.f32 %v357, 1.3333334
    %v1190 = vmul.f32 %v359, 1.3333334
    %v1191 = vmul.f32 %v505, 1.3333334
    %v1192 = vmul.f32 %v363, 1.3333334
    %v1193 = vmul.f32 %v365, 1.3333334
    %v1194 = vmul.f32 %v510, 1.3333334
    %v1195 = vmul.f32 %v369, 1.3333334
    %v1196 = vmul.f32 %v371, 1.3333334
    %v1197 = vmul.f32 %v515, 1.3333334
    %v1198 = vsel %vm1102, %v1150, 0.0
    %v1199 = vsel %vm1103, %v1151, 0.0
    %v1200 = vsel %vm1104, %v1152, 0.0
    %v1201 = vsel %vm1105, %v1153, 0.0
    %v1202 = vsel %vm1106, %v1154, 0.0
    %v1203 = vsel %vm1107, %v1155, 0.0
    %v1204 = vsel %vm1108, %v1156, 0.0
    %v1205 = vsel %vm1109, %v1157, 0.0
    %v1206 = vsel %vm1110, %v1158, 0.0
    %v1207 = vsel %vm1111, %v1159, 0.0
    %v1208 = vsel %vm1112, %v1160, 0.0
    %v1209 = vsel %vm1113, %v1161, 0.0
    %v1210 = vsel %vm1114, %v1162, 0.0
    %v1211 = vsel %vm1115, %v1163, 0.0
    %v1212 = vsel %vm1116, %v1164, 0.0
    %v1213 = vsel %vm1117, %v1165, 0.0
    %v1214 = vsel %vm1118, %v1166, 0.0
    %v1215 = vsel %vm1119, %v1167, 0.0
    %v1216 = vsel %vm1120, %v1168, 0.0
    %v1217 = vsel %vm1121, %v1169, 0.0
    %v1218 = vsel %vm1122, %v1170, 0.0
    %v1219 = vsel %vm1123, %v1171, 0.0
    %v1220 = vsel %vm1124, %v1172, 0.0
    %v1221 = vsel %vm1125, %v1173, 0.0
    %v1222 = vsel %vm1126, %v1174, 0.0
    %v1223 = vsel %vm1127, %v1175, 0.0
    %v1224 = vsel %vm1128, %v1176, 0.0
    %v1225 = vsel %vm1129, %v1177, 0.0
    %v1226 = vsel %vm1130, %v1178, 0.0
    %v1227 = vsel %vm1131, %v1179, 0.0
    %v1228 = vsel %vm1132, %v1180, 0.0
    %v1229 = vsel %vm1133, %v1181, 0.0
    %v1230 = vsel %vm1134, %v1182, 0.0
    %v1231 = vsel %vm1135, %v1183, 0.0
    %v1232 = vsel %vm1136, %v1184, 0.0
    %v1233 = vsel %vm1137, %v1185, 0.0
    %v1234 = vsel %vm1138, %v1186, 0.0
    %v1235 = vsel %vm1139, %v1187, 0.0
    %v1236 = vsel %vm1140, %v1188, 0.0
    %v1237 = vsel %vm1141, %v1189, 0.0
    %v1238 = vsel %vm1142, %v1190, 0.0
    %v1239 = vsel %vm1143, %v1191, 0.0
    %v1240 = vsel %vm1144, %v1192, 0.0
    %v1241 = vsel %vm1145, %v1193, 0.0
    %v1242 = vsel %vm1146, %v1194, 0.0
    %v1243 = vsel %vm1147, %v1195, 0.0
    %v1244 = vsel %vm1148, %v1196, 0.0
    %v1245 = vsel %vm1149, %v1197, 0.0
    %1246 = vst [vmem:[#allocation7] sm:$0xff] %v1198
    %1247 = vst [vmem:[#allocation7 + $0x8] sm:$0xff] %v1199
    %1248 = vst [vmem:[#allocation7 + $0x10] sm:$0xff] %v1200
    %1249 = vst [vmem:[#allocation7 + $0x18] sm:$0xff] %v1201
    %1250 = vst [vmem:[#allocation7 + $0x20] sm:$0xff] %v1202
    %1251 = vst [vmem:[#allocation7 + $0x28] sm:$0xff] %v1203
    %1252 = vst [vmem:[#allocation7 + $0x30] sm:$0xff] %v1204
    %1253 = vst [vmem:[#allocation7 + $0x38] sm:$0xff] %v1205
    %1254 = vst [vmem:[#allocation7 + $0x40] sm:$0xff] %v1206
    %1255 = vst [vmem:[#allocation7 + $0x48] sm:$0xff] %v1207
    %1256 = vst [vmem:[#allocation7 + $0x50] sm:$0xff] %v1208
    %1257 = vst [vmem:[#allocation7 + $0x58] sm:$0xff] %v1209
    %1258 = vst [vmem:[#allocation7 + $0x60] sm:$0xff] %v1210
    %1259 = vst [vmem:[#allocation7 + $0x68] sm:$0xff] %v1211
    %1260 = vst [vmem:[#allocation7 + $0x70] sm:$0xff] %v1212
    %1261 = vst [vmem:[#allocation7 + $0x78] sm:$0xff] %v1213
    %1262 = vst [vmem:[#allocation7 + $0x80] sm:$0xff] %v1214
    %1263 = vst [vmem:[#allocation7 + $0x88] sm:$0xff] %v1215
    %1264 = vst [vmem:[#allocation7 + $0x90] sm:$0xff] %v1216
    %1265 = vst [vmem:[#allocation7 + $0x98] sm:$0xff] %v1217
    %1266 = vst [vmem:[#allocation7 + $0xa0] sm:$0xff] %v1218
    %1267 = vst [vmem:[#allocation7 + $0xa8] sm:$0xff] %v1219
    %1268 = vst [vmem:[#allocation7 + $0xb0] sm:$0xff] %v1220
    %1269 = vst [vmem:[#allocation7 + $0xb8] sm:$0xff] %v1221
    %1270 = vst [vmem:[#allocation7 + $0xc0] sm:$0xff] %v1222
    %1271 = vst [vmem:[#allocation7 + $0xc8] sm:$0xff] %v1223
    %1272 = vst [vmem:[#allocation7 + $0xd0] sm:$0xff] %v1224
    %1273 = vst [vmem:[#allocation7 + $0xd8] sm:$0xff] %v1225
    %1274 = vst [vmem:[#allocation7 + $0xe0] sm:$0xff] %v1226
    %1275 = vst [vmem:[#allocation7 + $0xe8] sm:$0xff] %v1227
    %1276 = vst [vmem:[#allocation7 + $0xf0] sm:$0xff] %v1228
    %1277 = vst [vmem:[#allocation7 + $0xf8] sm:$0xff] %v1229
    %1278 = vst [vmem:[#allocation7 + $0x100] sm:$0xff] %v1230
    %1279 = vst [vmem:[#allocation7 + $0x108] sm:$0xff] %v1231
    %1280 = vst [vmem:[#allocation7 + $0x110] sm:$0xff] %v1232
    %1281 = vst [vmem:[#allocation7 + $0x118] sm:$0xff] %v1233
    %1282 = vst [vmem:[#allocation7 + $0x120] sm:$0xff] %v1234
    %1283 = vst [vmem:[#allocation7 + $0x128] sm:$0xff] %v1235
    %1284 = vst [vmem:[#allocation7 + $0x130] sm:$0xff] %v1236
    %1285 = vst [vmem:[#allocation7 + $0x138] sm:$0xff] %v1237
    %1286 = vst [vmem:[#allocation7 + $0x140] sm:$0xff] %v1238
    %1287 = vst [vmem:[#allocation7 + $0x148] sm:$0xff] %v1239
    %1288 = vst [vmem:[#allocation7 + $0x150] sm:$0xff] %v1240
    %1289 = vst [vmem:[#allocation7 + $0x158] sm:$0xff] %v1241
    %1290 = vst [vmem:[#allocation7 + $0x160] sm:$0xff] %v1242
    %1291 = vst [vmem:[#allocation7 + $0x168] sm:$0xff] %v1243
    %1292 = vst [vmem:[#allocation7 + $0x170] sm:$0xff] %v1244
    %1293 = vst [vmem:[#allocation7 + $0x178] sm:$0xff] %v1245
    // Predicated region
    $region14: #{tpu_custom_call.1} parent=1 // pred_check
      _
    $region15: #{tpu_custom_call.1} parent=1 // pred_check_branch
      %1295 = sbr.rel (0) target = $region17
    $region16: #{tpu_custom_call.1} parent=1 // pred_region
      %s1297 = ssub.s32 6144, 6144
      %1298 = vsyncadd [#allocation6], %s1297
      %s1299 = sshll.u32 [#allocation7], 4
      %s1300 = int_to_ptr.vmem [resolvable:$true] %s1299
      %1305 = dma.vmem_to_hbm [thread:$0]  %s1300, 6144, %s3, [#allocation6], 384, 384, 24
    $region17: #{tpu_custom_call.1} parent=1 // pred_fallthru
      _
    // Predicated region
    $region18: #{tpu_custom_call.1} parent=1 // pred_check
      _
    $region19: #{tpu_custom_call.1} parent=1 // pred_check_branch
      %1307 = sbr.rel (0) target = $region21
    $region20: #{tpu_custom_call.1} parent=1 // pred_region
      %1308 = dma.done [#allocation6], 6144
    $region21: #{tpu_custom_call.1} parent=1 // pred_fallthru
      _
    %1309 = vsyncpa [#allocation5], 1
    %1310 = vsyncpa [#allocation6], 1

</llo_original>
